<compile_context>
chip_gen: v5e
topology: v5e:2x2
jax: 0.10.0
libtpu: 0.0.40
codegen_flags: <defaults>
</compile_context>

<pallas_src>
import jax
import jax.numpy as jnp
from jax.experimental import pallas as pl
from jax.experimental.pallas import tpu as pltpu


def _consistency_kernel(x_ref, w_ref, out_ref):
    """x_ref: (tr, tl) native-dtype data tile; w_ref: (tr, 1) f32 keep weights;
    out_ref: (8, 128) f32 accumulator block, resident across the inner grid
    axis (same out block index for every inner step).  Accumulates
    sum(w * tanh(0.5 * x)); the affine part of sigmoid is applied in the
    wrapper."""
    @pl.when(pl.program_id(1) == 0)
    def _():
        out_ref[...] = jnp.zeros_like(out_ref)

    xf = x_ref[...].astype(jnp.float32)            # cast after DMA (cheap VPU)
    t = jnp.tanh(0.5 * xf)                         # one EUP transcendental / elem
    # (tr, 1) weight column broadcasts over lanes; full reduce to a scalar,
    # scalar broadcast-add into the lane-dense (8, 128) accumulator block.
    out_ref[...] += jnp.sum(t * w_ref[...])


def _sublane_pack(itemsize):
    # sublanes per packed 32-bit word: f32 -> 8, bf16 -> 16, int8/fp8 -> 32
    return max(8, 32 // itemsize)


def _pick_fold(rows, hw, pack):
    """Smallest k dividing hw such that rows*k is sublane-packed, preferring
    folds that keep the lane extent a multiple of 128."""
    best_k, best_score = 1, (-1, -1, -hw)
    for k in range(1, min(hw, 4 * pack) + 1):
        if hw % k:
            continue
        lane = hw // k
        score = (int((rows * k) % pack == 0), int(lane % 128 == 0), -k)
        if score > best_score:
            best_score, best_k = score, k
    return best_k


def _pick_lane_tile(R, L, itemsize, target_bytes):
    """Largest multiple-of-128 divisor of L with R*tile*itemsize <= target;
    mildly prefers an even step count (balanced 2-way parallel split)."""
    cands = [128 * m for m in range(1, L // 128 + 1) if L % (128 * m) == 0]
    fitting = [c for c in cands if R * c * itemsize <= target_bytes] or [128]
    best = max(fitting)
    if (L // best) % 2 == 1 and (L // best) > 1:
        even = [c for c in fitting if (L // c) % 2 == 0 and 2 * c >= best]
        if even:
            best = max(even)
    return best


def _pick_row_tile(R, L, itemsize, pack, target_bytes):
    """Row-block size for the ragged-lane fallback: multiple of the packing
    factor dividing R that keeps tile bytes under target (full R if R is not
    packable — full extent is always a legal block dim)."""
    if R % pack:
        return R
    cands = [pack * m for m in range(1, R // pack + 1) if R % (pack * m) == 0]
    fitting = [c for c in cands if c * L * itemsize <= target_bytes] or [min(cands)]
    return max(fitting)


def consistency_loss(inputs, seg_weight, *, target_block_bytes=8 * 1024 * 1024):
    B, C, H, W = inputs.shape
    rows, hw = B * C, H * W
    itemsize = jnp.dtype(inputs.dtype).itemsize
    pack = _sublane_pack(itemsize)

    # ---- per-(b, c) keep mask ------------------------------------------------
    # counted iff seg_weight[b] != 0 and c != seg_weight[b].
    # (Out-of-range nonzero seg_weight keeps all channels for that sample
    #  instead of raising like the PyTorch fancy-indexing would.)
    sw = seg_weight.astype(jnp.int32)
    keep = (sw[:, None] != 0) & (
        jnp.arange(C, dtype=jnp.int32)[None, :] != sw[:, None])
    keep_f = keep.astype(jnp.float32)

    # ---- refold to a sublane-packed, lane-dense 2-D view ----------------------
    k = _pick_fold(rows, hw, pack)
    R, L = rows * k, hw // k
    x2 = inputs.reshape(R, L)                         # metadata-only reshape
    w = jnp.repeat(keep_f.reshape(-1), k).reshape(R, 1)   # tiny: R floats

    # ---- tiling ----------------------------------------------------------------
    if L % 128 == 0:
        # stream over lane blocks, full row extent per block
        tl = _pick_lane_tile(R, L, itemsize, target_block_bytes)
        tr, nr, nl = R, 1, L // tl
    else:
        # ragged lane extent: stream over row (sublane) blocks instead so a
        # single block never has to hold the whole array (VMEM safety on v7x).
        tl = L
        tr = _pick_row_tile(R, L, itemsize, pack, target_block_bytes)
        nr, nl = R // tr, 1

    ns = nr * nl                                      # total streamed blocks
    nouter = 2 if (ns % 2 == 0 and ns >= 2) else 1    # balanced split for v7x 2 TCs
    steps = ns // nouter

    if nr == 1:                                       # lane-streamed
        x_map = lambda i, j: (0, i * steps + j)
        w_map = lambda i, j: (0, 0)
    else:                                             # row-streamed
        x_map = lambda i, j: (i * steps + j, 0)
        w_map = lambda i, j: (i * steps + j, 0)

    block_bytes = tr * tl * itemsize
    vmem_limit = int(min(max(32 * 2 ** 20, 2 * block_bytes + 4 * 2 ** 20),
                         100 * 2 ** 20))

    partials = pl.pallas_call(
        _consistency_kernel,
        out_shape=jax.ShapeDtypeStruct((nouter * 8, 128), jnp.float32),
        grid=(nouter, steps),
        in_specs=[
            pl.BlockSpec((tr, tl), x_map),            # streamed data tile
            pl.BlockSpec((tr, 1), w_map),             # tiny weight column
        ],
        # one resident accumulator block per outer index (reduction over j)
        out_specs=pl.BlockSpec((8, 128), lambda i, j: (i, 0)),
        compiler_params=pltpu.CompilerParams(
            dimension_semantics=("parallel", "arbitrary"),
            vmem_limit_bytes=vmem_limit),
    )(x2, w)

    # Every element of accumulator block i equals that block's partial sum.
    tanh_sum = jnp.sum(partials[::8, 0])
    # sigmoid(x) = 0.5 * tanh(0.5 x) + 0.5 ; re-apply the affine part once.
    n_kept = jnp.sum(keep_f) * jnp.float32(hw)
    total = 0.5 * tanh_sum + 0.5 * n_kept
    # torch.nansum in the module is applied to the already-reduced scalar: NaN -> 0.
    total = jnp.where(jnp.isnan(total), jnp.float32(0.0), total)
    # Denominator hardcodes 480*480*3 regardless of actual H, W, C — mirrors the module.
    denom = (jnp.sum(sw != 0) * 480 * 480 * 3 + 1).astype(jnp.float32)
    return total / denom


def _reference(inputs, seg_weight):
    """Pure-JAX reference mirroring the PyTorch forward."""
    B, C, H, W = inputs.shape
    sw = seg_weight.astype(jnp.int32)
    keep = (sw[:, None] != 0) & (jnp.arange(C)[None, :] != sw[:, None])
    sig = jax.nn.sigmoid(inputs.astype(jnp.float32))
    total = jnp.sum(sig * keep[:, :, None, None].astype(jnp.float32))
    total = jnp.where(jnp.isnan(total), jnp.float32(0.0), total)
    denom = (jnp.sum(sw != 0) * 480 * 480 * 3 + 1).astype(jnp.float32)
    return total / denom


if __name__ == "__main__":
    key = jax.random.PRNGKey(0)
    k1, k2 = jax.random.split(key)
    B, C, H, W = 2, 4, 16, 16
    inputs = jax.random.normal(k1, (B, C, H, W), dtype=jnp.float32)
    # per-sample class index in [0, C); 0 means "sample excluded"
    seg_weight = jax.random.randint(k2, (B,), 0, C, dtype=jnp.int32)

    out = consistency_loss(inputs, seg_weight)
    out = jax.block_until_ready(out)

    ref = _reference(inputs, seg_weight)
    assert jnp.allclose(out, ref, rtol=1e-5, atol=1e-6), (out, ref)
    print("KERNEL_OK")
</pallas_src>

<mosaic_0001>
module attributes {stable_mosaic.version = 11 : i64} {
  func.func @_consistency_kernel(%arg0: i32, %arg1: i32, %arg2: memref<8x256xf32, #tpu.memory_space<vmem>>, %arg3: memref<8x1xf32, #tpu.memory_space<vmem>>, %arg4: memref<8x128xf32, #tpu.memory_space<vmem>>) attributes {dimension_semantics = [#tpu.dimension_semantics<parallel>, #tpu.dimension_semantics<arbitrary>], iteration_bounds = array<i64: 1, 1>, scalar_prefetch = 0 : i64, scratch_operands = 0 : i64, tpu.core_type = #tpu.core_type<tc>, window_params = [{transform_indices = @transform_0, window_bounds = array<i64: 8, 256>}, {pipeline_mode = #tpu.pipeline_mode<synchronous>, transform_indices = @transform_1, window_bounds = array<i64: 8, 1>}, {transform_indices = @transform_2, window_bounds = array<i64: 8, 128>}]} {
    %c0_i32 = arith.constant 0 : i32
    %0 = arith.cmpi eq, %arg1, %c0_i32 : i32
    %1 = arith.extui %0 : i1 to i32
    %c0_i32_0 = arith.constant 0 : i32
    %2 = arith.cmpi ne, %1, %c0_i32_0 : i32
    scf.if %2 {
      %cst_9 = arith.constant 0.000000e+00 : f32
      %18 = vector.broadcast %cst_9 : f32 to vector<8x128xf32>
      %c0_10 = arith.constant 0 : index
      %c0_11 = arith.constant 0 : index
      %19 = vector.load %arg4[%c0_10, %c0_11] : memref<8x128xf32, #tpu.memory_space<vmem>>, vector<8x128xf32>
      tpu.vector_store %arg4[%c0_10, %c0_11], %18 {strides = array<i32>} : memref<8x128xf32, #tpu.memory_space<vmem>>, vector<8x128xf32>,
    } else {
    }
    %c0 = arith.constant 0 : index
    %c0_1 = arith.constant 0 : index
    %3 = vector.load %arg2[%c0, %c0_1] : memref<8x256xf32, #tpu.memory_space<vmem>>, vector<8x256xf32>
    %cst = arith.constant 5.000000e-01 : f32
    %4 = vector.broadcast %cst : f32 to vector<8x256xf32>
    %5 = arith.mulf %4, %3 : vector<8x256xf32>
    %6 = math.tanh %5 : vector<8x256xf32>
    %c0_2 = arith.constant 0 : index
    %c0_3 = arith.constant 0 : index
    %7 = vector.load %arg4[%c0_2, %c0_3] : memref<8x128xf32, #tpu.memory_space<vmem>>, vector<8x128xf32>
    %c0_4 = arith.constant 0 : index
    %c0_5 = arith.constant 0 : index
    %8 = vector.load %arg3[%c0_4, %c0_5] : memref<8x1xf32, #tpu.memory_space<vmem>>, vector<8x1xf32>
    %9 = vector.broadcast %8 : vector<8x1xf32> to vector<8x256xf32>
    %10 = arith.mulf %6, %9 : vector<8x256xf32>
    %11 = vector.shape_cast %10 : vector<8x256xf32> to vector<1x8x256xf32>
    %cst_6 = arith.constant dense<0.000000e+00> : vector<1xf32>
    %12 = vector.multi_reduction <add>, %11, %cst_6 [1, 2] : vector<1x8x256xf32> to vector<1xf32>
    %13 = vector.shape_cast %12 : vector<1xf32> to vector<1x1x1xf32>
    %14 = vector.extract %13[0, 0, 0] : f32 from vector<1x1x1xf32>
    %15 = vector.broadcast %14 : f32 to vector<8x128xf32>
    %16 = arith.addf %7, %15 : vector<8x128xf32>
    %c0_7 = arith.constant 0 : index
    %c0_8 = arith.constant 0 : index
    %17 = vector.load %arg4[%c0_7, %c0_8] : memref<8x128xf32, #tpu.memory_space<vmem>>, vector<8x128xf32>
    tpu.vector_store %arg4[%c0_7, %c0_8], %16 {strides = array<i32>} : memref<8x128xf32, #tpu.memory_space<vmem>>, vector<8x128xf32>,
    return
  }
  func.func @transform_0(%arg0: i32, %arg1: i32) -> (i32, i32) {
    %c1_i32 = arith.constant 1 : i32
    %0 = arith.muli %arg0, %c1_i32 : i32
    %1 = arith.addi %0, %arg1 : i32
    %c0_i32 = arith.constant 0 : i32
    %c0_i32_0 = arith.constant 0 : i32
    return %c0_i32, %1 : i32, i32
  }
  func.func @transform_1(%arg0: i32, %arg1: i32) -> (i32, i32) {
    %c0_i32 = arith.constant 0 : i32
    %c0_i32_0 = arith.constant 0 : i32
    %c0_i32_1 = arith.constant 0 : i32
    return %c0_i32, %c0_i32_0 : i32, i32
  }
  func.func @transform_2(%arg0: i32, %arg1: i32) -> (i32, i32) {
    %c0_i32 = arith.constant 0 : i32
    %c0_i32_0 = arith.constant 0 : i32
    return %arg0, %c0_i32 : i32, i32
  }
}

</mosaic_0001>

<llo_original>
// kernel: tpu_custom_call.1
$region0: #{tpu_custom_call.1}
  #allocation0 [shape = 'u32[]', space=smem, size = 0x4, offset = 0x4, fixed_abs, tag = 'smem constant byte address 0x4 - core index']
  #allocation1 [shape = 'u32[72,128]{1,0:T(1,128)}', space=vmem, size = 0x9000, scoped, tag = 'internal scratch']
  %s0 = inlined_call_operand.hbm [shape: f32[8,256], index: 0, kind: input, shape index: {}]
  %s1 = inlined_call_operand.vmem [shape: f32[8,1], index: 1, kind: input, shape index: {}]
  %s2 = inlined_call_operand.hbm [shape: f32[8,128], index: 2, kind: output, shape index: {}]
  %s3 = sld [smem:[#allocation0]]
  $region26: #{tpu_custom_call.1} parent=0
    _
  %s5 = ssub.s32 1, %s3
  %s6 = scalar_select 0, %s5, %s3
  $region1: #{tpu_custom_call.1} parent=0
    #allocation2 [shape = 'u8[8192]{0}', space=vmem, size = 0x2000, scoped, tag = 'input window, operand 0, single buffered']
    #allocation3 [shape = 's32[1]{0}', space=sflag, size = 0x4, scoped, tag = 'scoped memory for tpu_custom_call.1']
    #allocation4 [shape = 's32[1]{0}', space=sflag, size = 0x4, scoped, tag = 'scoped memory for tpu_custom_call.1']
    #allocation5 [shape = 'u8[4096]{0}', space=vmem, size = 0x1000, scoped, tag = 'output window, operand 0, single buffered']
    %7 = vsyncpa [#allocation3], 0
    %8 = vsyncpa [#allocation4], 0
    // Predicated region
    $region2: #{tpu_custom_call.1} parent=1 // pred_check
      _
    $region3: #{tpu_custom_call.1} parent=1 // pred_check_branch
      %10 = sbr.rel (0) target = $region5
    $region4: #{tpu_custom_call.1} parent=1 // pred_region
      %s11 = sadd.s32 0, 0
      %s12 = smul.u32 2, %s11
      %14 = vsyncadd [#allocation3], 0
      %s15 = smul.addr %s12, 8
      %s16 = scalar_lea.hbm %s0, %s15
      %s18 = sshll.u32 %s16, 4
      %s19 = int_to_ptr.hbm [resolvable:$true] %s18
      %s20 = sshll.u32 [#allocation2], 4
      %s21 = int_to_ptr.vmem [resolvable:$true] %s20
      %23 = dma.hbm_to_vmem [thread:$0]  %s19, 256, %s21, [#allocation3]
    $region5: #{tpu_custom_call.1} parent=1 // pred_fallthru
      _
    // Predicated region
    $region6: #{tpu_custom_call.1} parent=1 // pred_check
      _
    $region7: #{tpu_custom_call.1} parent=1 // pred_check_branch
      %25 = sbr.rel (0) target = $region9
    $region8: #{tpu_custom_call.1} parent=1 // pred_region
      _
    $region9: #{tpu_custom_call.1} parent=1 // pred_fallthru
      _
    // Predicated region
    $region10: #{tpu_custom_call.1} parent=1 // pred_check
      _
    $region11: #{tpu_custom_call.1} parent=1 // pred_check_branch
      %27 = sbr.rel (0) target = $region13
    $region12: #{tpu_custom_call.1} parent=1 // pred_region
      %29 = dma.done [#allocation3], 256
    $region13: #{tpu_custom_call.1} parent=1 // pred_fallthru
      _
    %s30 = sadd.s32 0, 0
    %s31 = smul.u32 2, %s30
    %p32 = scmp.eq.s32.totalorder 0, 0
    // Predicated region
    $region14: #{tpu_custom_call.1} parent=1 // pred_check
      %p33 = pneg %p32
    $region15: #{tpu_custom_call.1} parent=1 // pred_check_branch
      %35 = sbr.rel (%p33) target = $region17
    $region16: #{tpu_custom_call.1} parent=1 // pred_region
      %36 = vst [vmem:[#allocation5] sm:$0xff] 0.0
    $region17: #{tpu_custom_call.1} parent=1 // pred_fallthru
      _
    %v37 = vld [vmem:[#allocation2] sm:$0xff]
    %v38 = vld [vmem:[#allocation2 + $0x8] sm:$0xff]
    %v39 = vmul.f32 %v37, 0.5
    %v40 = vmul.f32 %v38, 0.5
    %v41 = vtanh.pop %v39
    %v42 = vtanh.pop %v40
    %v43 = vld [vmem:[#allocation5] sm:$0xff]
    %v44 = vld [vmem:[%s1] sm:$0xff]
    %46 = vset.pattern.permute.xlu0 0
    %47 = vperm.xlu0 %46, %v44
    %v48 = vpop.permute.xlu0 %47
    %v50 = vmul.f32 %v41, %v48
    %v51 = vmul.f32 %v42, %v48
    %v52 = vadd.f32 %v50, %v51
    %53 = vadd.xlane.f32.xlu0 %v52
    %v54 = vpop.xlane.xlu0 %53
    %v55 = vrot.slane %v54, 4
    %v56 = vadd.f32 %v54, %v55
    %v57 = vrot.slane %v56, 2
    %v58 = vadd.f32 %v56, %v57
    %v59 = vrot.slane %v58, 1
    %v60 = vadd.f32 %v58, %v59
    %s61 = vtos %v60
    %v62 = vstv %s61
    %v63 = vadd.f32 %v43, %v62
    %64 = vst [vmem:[#allocation5] sm:$0xff] %v63
    // Predicated region
    $region18: #{tpu_custom_call.1} parent=1 // pred_check
      _
    $region19: #{tpu_custom_call.1} parent=1 // pred_check_branch
      %66 = sbr.rel (0) target = $region21
    $region20: #{tpu_custom_call.1} parent=1 // pred_region
      %68 = vsyncadd [#allocation4], 0
      %s70 = sshll.u32 [#allocation5], 4
      %s71 = int_to_ptr.vmem [resolvable:$true] %s70
      %s72 = sshll.u32 %s2, 4
      %s73 = int_to_ptr.hbm [resolvable:$true] %s72
      %75 = dma.vmem_to_hbm [thread:$0]  %s71, 128, %s73, [#allocation4]
    $region21: #{tpu_custom_call.1} parent=1 // pred_fallthru
      _
    // Predicated region
    $region22: #{tpu_custom_call.1} parent=1 // pred_check
      _
    $region23: #{tpu_custom_call.1} parent=1 // pred_check_branch
      %77 = sbr.rel (0) target = $region25
    $region24: #{tpu_custom_call.1} parent=1 // pred_region
      %79 = dma.done [#allocation4], 128
    $region25: #{tpu_custom_call.1} parent=1 // pred_fallthru
      _
    %80 = vsyncpa [#allocation3], 1
    %81 = vsyncpa [#allocation4], 1

</llo_original>
